<compile_context>
chip_gen: v5e
topology: v5e:2x2
jax: 0.10.0
libtpu: 0.0.40
codegen_flags: <defaults>
</compile_context>

<pallas_src>
import jax
import jax.numpy as jnp
from jax.experimental import pallas as pl
from jax.experimental.pallas import tpu as pltpu

HIDDEN = 128
LANE = 128  # internal lane-padded width of the action head


def policy_kernel(x_ref, w1_ref, b1_ref, w2_ref, b2_ref, w3_ref, b3_ref, o_ref):
    """One batch tile: fused matmul->relu->matmul->relu->matmul->softmax."""
    # Cast to bf16 in-kernel (halves x-side HBM traffic vs a wrapper cast).
    x = x_ref[...].astype(jnp.bfloat16)  # (TILE_B, in)

    h1 = jnp.dot(x, w1_ref[...], preferred_element_type=jnp.float32) + b1_ref[...]
    h1 = jnp.maximum(h1, 0.0)

    h2 = jnp.dot(h1.astype(jnp.bfloat16), w2_ref[...],
                 preferred_element_type=jnp.float32) + b2_ref[...]
    h2 = jnp.maximum(h2, 0.0)

    logits = jnp.dot(h2.astype(jnp.bfloat16), w3_ref[...],
                     preferred_element_type=jnp.float32) + b3_ref[...]
    # Padded head columns carry a -1e30 bias, so exp(logit - m) == 0 for them
    # and they never perturb the softmax of the real columns.

    m = jnp.max(logits, axis=-1, keepdims=True)
    e = jnp.exp(logits - m)
    s = jnp.sum(e, axis=-1, keepdims=True)
    probs = e / s  # exact divide: rows sum to 1 (downstream log-prob safety)

    out_size = o_ref.shape[-1]
    o_ref[...] = probs[:, :out_size].astype(o_ref.dtype)  # narrow store only


def prepare_params(params):
    """One-time parameter prep: pad head to 128 lanes, cast weights to bf16."""
    w1, b1, w2, b2, w3, b3 = (
        params["w1"], params["b1"], params["w2"],
        params["b2"], params["w3"], params["b3"],
    )
    out_size = int(w3.shape[1])
    w3p = jnp.zeros((HIDDEN, LANE), jnp.float32).at[:, :out_size].set(w3)
    b3p = jnp.full((1, LANE), -1e30, jnp.float32).at[:, :out_size].set(
        b3.reshape(1, -1))
    return {
        "w1": w1.astype(jnp.bfloat16),
        "b1": b1.reshape(1, -1).astype(jnp.float32),
        "w2": w2.astype(jnp.bfloat16),
        "b2": b2.reshape(1, -1).astype(jnp.float32),
        "w3": w3p.astype(jnp.bfloat16),
        "b3": b3p,
        "out_size": out_size,  # static python int
    }


def policy_network_forward(x, prepared, *, tile_b=2048):
    """x: (B, input_size) float32. prepared: output of prepare_params()."""
    B, in_size = x.shape
    out_size = prepared["out_size"]

    # Batch tile: big (amortize ~0.35us/step), 8-aligned, and capped at
    # round_up(ceil(B/2), 8) so large batches always produce >=2 grid steps
    # (v7x megacore sharding via "parallel").
    half = ((-(-B // 2) + 7) // 8) * 8
    tile = max(8, min(tile_b, half))
    Bp = ((B + tile - 1) // tile) * tile
    xp = x if Bp == B else jnp.pad(x, ((0, Bp - B), (0, 0)))
    nb = Bp // tile

    def resident(a):  # full-array VMEM-resident block (weights / biases)
        return pl.BlockSpec(a.shape, lambda i: (0,) * a.ndim)

    out = pl.pallas_call(
        policy_kernel,
        out_shape=jax.ShapeDtypeStruct((Bp, out_size), jnp.float32),
        grid=(nb,),
        in_specs=[
            pl.BlockSpec((tile, in_size), lambda i: (i, 0)),  # x tiled over batch
            resident(prepared["w1"]), resident(prepared["b1"]),
            resident(prepared["w2"]), resident(prepared["b2"]),
            resident(prepared["w3"]), resident(prepared["b3"]),
        ],
        out_specs=pl.BlockSpec((tile, out_size), lambda i: (i, 0)),
        compiler_params=pltpu.CompilerParams(
            dimension_semantics=("parallel",),
        ),
    )(xp, prepared["w1"], prepared["b1"], prepared["w2"], prepared["b2"],
      prepared["w3"], prepared["b3"])

    return out if Bp == B else out[:B]


def init_params(key, input_size, output_size, hidden=HIDDEN):
    """Deterministic init mimicking nn.Linear's default U(-1/sqrt(fan_in), +)."""
    def linear(k, fan_in, fan_out):
        kw, kb = jax.random.split(k)
        bound = 1.0 / jnp.sqrt(float(fan_in))
        w = jax.random.uniform(kw, (fan_in, fan_out), jnp.float32, -bound, bound)
        b = jax.random.uniform(kb, (1, fan_out), jnp.float32, -bound, bound)
        return w, b

    k1, k2, k3 = jax.random.split(key, 3)
    w1, b1 = linear(k1, input_size, hidden)
    w2, b2 = linear(k2, hidden, hidden)
    w3, b3 = linear(k3, hidden, output_size)
    return {"w1": w1, "b1": b1, "w2": w2, "b2": b2, "w3": w3, "b3": b3}


def reference_forward(x, p):
    h1 = jax.nn.relu(x @ p["w1"] + p["b1"])
    h2 = jax.nn.relu(h1 @ p["w2"] + p["b2"])
    return jax.nn.softmax(h2 @ p["w3"] + p["b3"], axis=-1)


if __name__ == "__main__":
    key = jax.random.PRNGKey(0)
    k_params, k_x, k_x2 = jax.random.split(key, 3)

    batch = 8
    input_size = 4      # e.g. CartPole observation dim
    output_size = 2     # e.g. CartPole action dim

    params = init_params(k_params, input_size, output_size)
    prepared = prepare_params(params)   # one-time, hoisted out of the forward
    x = jax.random.normal(k_x, (batch, input_size), jnp.float32)

    probs = jax.block_until_ready(policy_network_forward(x, prepared))
    ref = reference_forward(x, params)

    assert probs.shape == (batch, output_size)
    # bf16 MXU feed -> loosened tolerances vs f32 reference.
    assert jnp.allclose(probs, ref, atol=2e-2, rtol=2e-2)
    # Exact divide -> rows sum to 1 to f32 precision.
    assert jnp.allclose(jnp.sum(probs, axis=-1), jnp.ones((batch,)), atol=1e-3)

    # Exercise the multi-tile grid + batch-padding path with a small tile.
    batch2 = 100
    x2 = jax.random.normal(k_x2, (batch2, input_size), jnp.float32)
    probs2 = jax.block_until_ready(
        policy_network_forward(x2, prepared, tile_b=64))
    ref2 = reference_forward(x2, params)
    assert probs2.shape == (batch2, output_size)
    assert jnp.allclose(probs2, ref2, atol=2e-2, rtol=2e-2)
    assert jnp.allclose(jnp.sum(probs2, axis=-1), jnp.ones((batch2,)), atol=1e-3)

    print("KERNEL_OK")
</pallas_src>

<mosaic_0001>
module attributes {stable_mosaic.version = 11 : i64} {
  func.func @policy_kernel(%arg0: i32, %arg1: memref<8x4xf32, #tpu.memory_space<vmem>>, %arg2: memref<4x128xbf16, #tpu.memory_space<vmem>>, %arg3: memref<1x128xf32, #tpu.memory_space<vmem>>, %arg4: memref<128x128xbf16, #tpu.memory_space<vmem>>, %arg5: memref<1x128xf32, #tpu.memory_space<vmem>>, %arg6: memref<128x128xbf16, #tpu.memory_space<vmem>>, %arg7: memref<1x128xf32, #tpu.memory_space<vmem>>, %arg8: memref<8x2xf32, #tpu.memory_space<vmem>>) attributes {dimension_semantics = [#tpu.dimension_semantics<parallel>], iteration_bounds = array<i64: 1>, scalar_prefetch = 0 : i64, scratch_operands = 0 : i64, tpu.core_type = #tpu.core_type<tc>, window_params = [{transform_indices = @transform_0, window_bounds = array<i64: 8, 4>}, {pipeline_mode = #tpu.pipeline_mode<synchronous>, transform_indices = @transform_1, window_bounds = array<i64: 4, 128>}, {pipeline_mode = #tpu.pipeline_mode<synchronous>, transform_indices = @transform_2, window_bounds = array<i64: 1, 128>}, {pipeline_mode = #tpu.pipeline_mode<synchronous>, transform_indices = @transform_3, window_bounds = array<i64: 128, 128>}, {pipeline_mode = #tpu.pipeline_mode<synchronous>, transform_indices = @transform_4, window_bounds = array<i64: 1, 128>}, {pipeline_mode = #tpu.pipeline_mode<synchronous>, transform_indices = @transform_5, window_bounds = array<i64: 128, 128>}, {pipeline_mode = #tpu.pipeline_mode<synchronous>, transform_indices = @transform_6, window_bounds = array<i64: 1, 128>}, {transform_indices = @transform_7, window_bounds = array<i64: 8, 2>}]} {
    %c0 = arith.constant 0 : index
    %c0_0 = arith.constant 0 : index
    %0 = vector.load %arg1[%c0, %c0_0] : memref<8x4xf32, #tpu.memory_space<vmem>>, vector<8x4xf32>
    %1 = arith.truncf %0 : vector<8x4xf32> to vector<8x4xbf16>
    %c0_1 = arith.constant 0 : index
    %c0_2 = arith.constant 0 : index
    %2 = vector.load %arg2[%c0_1, %c0_2] : memref<4x128xbf16, #tpu.memory_space<vmem>>, vector<4x128xbf16>
    %cst = arith.constant dense<0.000000e+00> : vector<8x128xf32>
    %3 = tpu.matmul %1, %2, %cst {dimension_numbers = #tpu.dot_dimension_numbers<[1], [0], [0], [1], [0, 0, 1, 1], [], []>} : vector<8x4xbf16>, vector<4x128xbf16>, vector<8x128xf32> -> vector<8x128xf32>
    %c0_3 = arith.constant 0 : index
    %c0_4 = arith.constant 0 : index
    %4 = vector.load %arg3[%c0_3, %c0_4] : memref<1x128xf32, #tpu.memory_space<vmem>>, vector<1x128xf32>
    %5 = vector.broadcast %4 : vector<1x128xf32> to vector<8x128xf32>
    %6 = arith.addf %3, %5 : vector<8x128xf32>
    %cst_5 = arith.constant 0.000000e+00 : f32
    %7 = vector.broadcast %cst_5 : f32 to vector<8x128xf32>
    %8 = arith.maximumf %6, %7 : vector<8x128xf32>
    %9 = arith.truncf %8 : vector<8x128xf32> to vector<8x128xbf16>
    %c0_6 = arith.constant 0 : index
    %c0_7 = arith.constant 0 : index
    %10 = vector.load %arg4[%c0_6, %c0_7] : memref<128x128xbf16, #tpu.memory_space<vmem>>, vector<128x128xbf16>
    %cst_8 = arith.constant dense<0.000000e+00> : vector<8x128xf32>
    %11 = tpu.matmul %9, %10, %cst_8 {dimension_numbers = #tpu.dot_dimension_numbers<[1], [0], [0], [1], [0, 0, 1, 1], [], []>} : vector<8x128xbf16>, vector<128x128xbf16>, vector<8x128xf32> -> vector<8x128xf32>
    %c0_9 = arith.constant 0 : index
    %c0_10 = arith.constant 0 : index
    %12 = vector.load %arg5[%c0_9, %c0_10] : memref<1x128xf32, #tpu.memory_space<vmem>>, vector<1x128xf32>
    %13 = vector.broadcast %12 : vector<1x128xf32> to vector<8x128xf32>
    %14 = arith.addf %11, %13 : vector<8x128xf32>
    %cst_11 = arith.constant 0.000000e+00 : f32
    %15 = vector.broadcast %cst_11 : f32 to vector<8x128xf32>
    %16 = arith.maximumf %14, %15 : vector<8x128xf32>
    %17 = arith.truncf %16 : vector<8x128xf32> to vector<8x128xbf16>
    %c0_12 = arith.constant 0 : index
    %c0_13 = arith.constant 0 : index
    %18 = vector.load %arg6[%c0_12, %c0_13] : memref<128x128xbf16, #tpu.memory_space<vmem>>, vector<128x128xbf16>
    %cst_14 = arith.constant dense<0.000000e+00> : vector<8x128xf32>
    %19 = tpu.matmul %17, %18, %cst_14 {dimension_numbers = #tpu.dot_dimension_numbers<[1], [0], [0], [1], [0, 0, 1, 1], [], []>} : vector<8x128xbf16>, vector<128x128xbf16>, vector<8x128xf32> -> vector<8x128xf32>
    %c0_15 = arith.constant 0 : index
    %c0_16 = arith.constant 0 : index
    %20 = vector.load %arg7[%c0_15, %c0_16] : memref<1x128xf32, #tpu.memory_space<vmem>>, vector<1x128xf32>
    %21 = vector.broadcast %20 : vector<1x128xf32> to vector<8x128xf32>
    %22 = arith.addf %19, %21 : vector<8x128xf32>
    %cst_17 = arith.constant dense<0xFF800000> : vector<8xf32>
    %23 = vector.multi_reduction <maximumf>, %22, %cst_17 [1] : vector<8x128xf32> to vector<8xf32>
    %24 = vector.shape_cast %23 : vector<8xf32> to vector<8x1xf32>
    %25 = vector.broadcast %24 : vector<8x1xf32> to vector<8x128xf32>
    %26 = arith.subf %22, %25 : vector<8x128xf32>
    %27 = math.exp %26 : vector<8x128xf32>
    %cst_18 = arith.constant dense<0.000000e+00> : vector<8xf32>
    %28 = vector.multi_reduction <add>, %27, %cst_18 [1] : vector<8x128xf32> to vector<8xf32>
    %29 = vector.shape_cast %28 : vector<8xf32> to vector<8x1xf32>
    %30 = vector.broadcast %29 : vector<8x1xf32> to vector<8x128xf32>
    %31 = arith.divf %27, %30 : vector<8x128xf32>
    %32 = vector.extract_strided_slice %31 {offsets = [0, 0], sizes = [8, 2], strides = [1, 1]} : vector<8x128xf32> to vector<8x2xf32>
    %c0_19 = arith.constant 0 : index
    %c0_20 = arith.constant 0 : index
    %33 = vector.load %arg8[%c0_19, %c0_20] : memref<8x2xf32, #tpu.memory_space<vmem>>, vector<8x2xf32>
    tpu.vector_store %arg8[%c0_19, %c0_20], %32 {strides = array<i32>} : memref<8x2xf32, #tpu.memory_space<vmem>>, vector<8x2xf32>,
    return
  }
  func.func @transform_0(%arg0: i32) -> (i32, i32) {
    %c0_i32 = arith.constant 0 : i32
    %c0_i32_0 = arith.constant 0 : i32
    return %arg0, %c0_i32 : i32, i32
  }
  func.func @transform_1(%arg0: i32) -> (i32, i32) {
    %c0_i32 = arith.constant 0 : i32
    %c0_i32_0 = arith.constant 0 : i32
    %c0_i32_1 = arith.constant 0 : i32
    return %c0_i32, %c0_i32_0 : i32, i32
  }
  func.func @transform_2(%arg0: i32) -> (i32, i32) {
    %c0_i32 = arith.constant 0 : i32
    %c0_i32_0 = arith.constant 0 : i32
    %c0_i32_1 = arith.constant 0 : i32
    return %c0_i32, %c0_i32_0 : i32, i32
  }
  func.func @transform_3(%arg0: i32) -> (i32, i32) {
    %c0_i32 = arith.constant 0 : i32
    %c0_i32_0 = arith.constant 0 : i32
    %c0_i32_1 = arith.constant 0 : i32
    return %c0_i32, %c0_i32_0 : i32, i32
  }
  func.func @transform_4(%arg0: i32) -> (i32, i32) {
    %c0_i32 = arith.constant 0 : i32
    %c0_i32_0 = arith.constant 0 : i32
    %c0_i32_1 = arith.constant 0 : i32
    return %c0_i32, %c0_i32_0 : i32, i32
  }
  func.func @transform_5(%arg0: i32) -> (i32, i32) {
    %c0_i32 = arith.constant 0 : i32
    %c0_i32_0 = arith.constant 0 : i32
    %c0_i32_1 = arith.constant 0 : i32
    return %c0_i32, %c0_i32_0 : i32, i32
  }
  func.func @transform_6(%arg0: i32) -> (i32, i32) {
    %c0_i32 = arith.constant 0 : i32
    %c0_i32_0 = arith.constant 0 : i32
    %c0_i32_1 = arith.constant 0 : i32
    return %c0_i32, %c0_i32_0 : i32, i32
  }
  func.func @transform_7(%arg0: i32) -> (i32, i32) {
    %c0_i32 = arith.constant 0 : i32
    %c0_i32_0 = arith.constant 0 : i32
    return %arg0, %c0_i32 : i32, i32
  }
}

</mosaic_0001>

<llo_original>
// kernel: tpu_custom_call.1
$region0: #{tpu_custom_call.1}
  #allocation0 [shape = 'u32[]', space=smem, size = 0x4, offset = 0x4, fixed_abs, tag = 'smem constant byte address 0x4 - core index']
  #allocation1 [shape = 'u32[72,128]{1,0:T(1,128)}', space=vmem, size = 0x9000, scoped, tag = 'internal scratch']
  %s0 = inlined_call_operand.vmem [shape: f32[8,4], index: 0, kind: input, shape index: {}]
  %s1 = inlined_call_operand.vmem [shape: bf16[4,128], index: 1, kind: input, shape index: {}]
  %s2 = inlined_call_operand.vmem [shape: f32[1,128], index: 2, kind: input, shape index: {}]
  %s3 = inlined_call_operand.hbm [shape: bf16[128,128], index: 3, kind: input, shape index: {}]
  %s4 = inlined_call_operand.vmem [shape: f32[1,128], index: 4, kind: input, shape index: {}]
  %s5 = inlined_call_operand.hbm [shape: bf16[128,128], index: 5, kind: input, shape index: {}]
  %s6 = inlined_call_operand.vmem [shape: f32[1,128], index: 6, kind: input, shape index: {}]
  %s7 = inlined_call_operand.vmem [shape: f32[8,2], index: 7, kind: output, shape index: {}]
  %s8 = sld [smem:[#allocation0]]
  $region46: #{tpu_custom_call.1} parent=0
    _
  %s10 = ssub.s32 1, %s8
  %s11 = scalar_select 0, %s10, %s8
  $region1: #{tpu_custom_call.1} parent=0
    #allocation2 [shape = 'u8[32768]{0}', space=vmem, size = 0x8000, scoped, tag = 'input window, operand 3, single buffered']
    #allocation3 [shape = 's32[1]{0}', space=sflag, size = 0x4, scoped, tag = 'scoped memory for tpu_custom_call.1']
    #allocation4 [shape = 'u8[32768]{0}', space=vmem, size = 0x8000, scoped, tag = 'input window, operand 5, single buffered']
    #allocation5 [shape = 's32[1]{0}', space=sflag, size = 0x4, scoped, tag = 'scoped memory for tpu_custom_call.1']
    %12 = vsyncpa [#allocation3], 0
    %13 = vsyncpa [#allocation5], 0
    // Predicated region
    $region2: #{tpu_custom_call.1} parent=1 // pred_check
      _
    $region3: #{tpu_custom_call.1} parent=1 // pred_check_branch
      %15 = sbr.rel (0) target = $region5
    $region4: #{tpu_custom_call.1} parent=1 // pred_region
      _
    $region5: #{tpu_custom_call.1} parent=1 // pred_fallthru
      _
    // Predicated region
    $region6: #{tpu_custom_call.1} parent=1 // pred_check
      _
    $region7: #{tpu_custom_call.1} parent=1 // pred_check_branch
      %17 = sbr.rel (0) target = $region9
    $region8: #{tpu_custom_call.1} parent=1 // pred_region
      _
    $region9: #{tpu_custom_call.1} parent=1 // pred_fallthru
      _
    // Predicated region
    $region10: #{tpu_custom_call.1} parent=1 // pred_check
      _
    $region11: #{tpu_custom_call.1} parent=1 // pred_check_branch
      %19 = sbr.rel (0) target = $region13
    $region12: #{tpu_custom_call.1} parent=1 // pred_region
      _
    $region13: #{tpu_custom_call.1} parent=1 // pred_fallthru
      _
    // Predicated region
    $region14: #{tpu_custom_call.1} parent=1 // pred_check
      _
    $region15: #{tpu_custom_call.1} parent=1 // pred_check_branch
      %21 = sbr.rel (0) target = $region17
    $region16: #{tpu_custom_call.1} parent=1 // pred_region
      %23 = vsyncadd [#allocation3], 0
      %s24 = sshll.u32 %s3, 4
      %s25 = int_to_ptr.hbm [resolvable:$true] %s24
      %s26 = sshll.u32 [#allocation2], 4
      %s27 = int_to_ptr.vmem [resolvable:$true] %s26
      %32 = dma.hbm_to_vmem [thread:$0]  %s25, 1024, %s27, [#allocation3], 64, 64, 4
    $region17: #{tpu_custom_call.1} parent=1 // pred_fallthru
      _
    // Predicated region
    $region18: #{tpu_custom_call.1} parent=1 // pred_check
      _
    $region19: #{tpu_custom_call.1} parent=1 // pred_check_branch
      %34 = sbr.rel (0) target = $region21
    $region20: #{tpu_custom_call.1} parent=1 // pred_region
      _
    $region21: #{tpu_custom_call.1} parent=1 // pred_fallthru
      _
    // Predicated region
    $region22: #{tpu_custom_call.1} parent=1 // pred_check
      _
    $region23: #{tpu_custom_call.1} parent=1 // pred_check_branch
      %36 = sbr.rel (0) target = $region25
    $region24: #{tpu_custom_call.1} parent=1 // pred_region
      %38 = vsyncadd [#allocation5], 0
      %s39 = sshll.u32 %s5, 4
      %s40 = int_to_ptr.hbm [resolvable:$true] %s39
      %s41 = sshll.u32 [#allocation4], 4
      %s42 = int_to_ptr.vmem [resolvable:$true] %s41
      %47 = dma.hbm_to_vmem [thread:$0]  %s40, 1024, %s42, [#allocation5], 64, 64, 4
    $region25: #{tpu_custom_call.1} parent=1 // pred_fallthru
      _
    // Predicated region
    $region26: #{tpu_custom_call.1} parent=1 // pred_check
      _
    $region27: #{tpu_custom_call.1} parent=1 // pred_check_branch
      %49 = sbr.rel (0) target = $region29
    $region28: #{tpu_custom_call.1} parent=1 // pred_region
      _
    $region29: #{tpu_custom_call.1} parent=1 // pred_fallthru
      _
    // Predicated region
    $region30: #{tpu_custom_call.1} parent=1 // pred_check
      _
    $region31: #{tpu_custom_call.1} parent=1 // pred_check_branch
      %51 = sbr.rel (0) target = $region33
    $region32: #{tpu_custom_call.1} parent=1 // pred_region
      %53 = dma.done [#allocation3], 1024
    $region33: #{tpu_custom_call.1} parent=1 // pred_fallthru
      _
    // Predicated region
    $region34: #{tpu_custom_call.1} parent=1 // pred_check
      _
    $region35: #{tpu_custom_call.1} parent=1 // pred_check_branch
      %55 = sbr.rel (0) target = $region37
    $region36: #{tpu_custom_call.1} parent=1 // pred_region
      %57 = dma.done [#allocation5], 1024
    $region37: #{tpu_custom_call.1} parent=1 // pred_fallthru
      _
    %v59 = vld [vmem:[%s0] sm:$0xff]
    %v60 = vpack.c.bf16 %v59, %v59
    %v61 = vld [vmem:[%s1] sm:$0x3]
    %v62 = vld [vmem:[%s2] sm:$0x1]
    %v64 = vperm.slane %v62, 0
    %vm66 = vcmask 31744
    %v68 = vsel %vm66, %v60, 0
    %vm70 = vcmask 1041408
    %v72 = vsel %vm70, %v61, 0
    %74 = vmatpush.bf16.msra.mxu0 0
    %75 = vmatpush.bf16.msra.mxu0 0
    %76 = vmatpush.bf16.msra.mxu0 0
    %77 = vmatpush.bf16.msra.mxu0 0
    %78 = vmatpush.bf16.msra.mxu0 0
    %79 = vmatpush.bf16.msra.mxu0 0
    %80 = vmatpush.bf16.msra.mxu0 0
    %81 = vmatpush.bf16.msra.mxu0 %v72
    %82 = vmatmul.bf16.gmra.mxu0 %v68
    %v83 = vpop.f32.mrf.mxu0
    %v84 = vadd.f32 %v64, %v83
    %v85 = vpop.f32.mrf.mxu0
    %86 = vdwg.mxu0
    %v87 = vmax.f32 %v84, 0.0
    %v88 = vpack.c.bf16 %v87, %v87
    %v89 = vld [vmem:[#allocation2] sm:$0xf]
    %v90 = vld [vmem:[#allocation2 + $0x4] sm:$0xf]
    %v91 = vld [vmem:[#allocation2 + $0x8] sm:$0xf]
    %v92 = vld [vmem:[#allocation2 + $0xc] sm:$0xf]
    %v93 = vld [vmem:[#allocation2 + $0x10] sm:$0xf]
    %v94 = vld [vmem:[#allocation2 + $0x14] sm:$0xf]
    %v95 = vld [vmem:[#allocation2 + $0x18] sm:$0xf]
    %v96 = vld [vmem:[#allocation2 + $0x1c] sm:$0xf]
    %v97 = vld [vmem:[#allocation2 + $0x20] sm:$0xf]
    %v98 = vld [vmem:[#allocation2 + $0x24] sm:$0xf]
    %v99 = vld [vmem:[#allocation2 + $0x28] sm:$0xf]
    %v100 = vld [vmem:[#allocation2 + $0x2c] sm:$0xf]
    %v101 = vld [vmem:[#allocation2 + $0x30] sm:$0xf]
    %v102 = vld [vmem:[#allocation2 + $0x34] sm:$0xf]
    %v103 = vld [vmem:[#allocation2 + $0x38] sm:$0xf]
    %v104 = vld [vmem:[#allocation2 + $0x3c] sm:$0xf]
    %v105 = vld [vmem:[%s4] sm:$0x1]
    %v107 = vperm.slane %v105, 0
    %v125 = vunpack.c.l.b16 %v89
    %v126 = vunpack.c.l.b16 %v90
    %v127 = vunpack.c.l.b16 %v91
    %v128 = vunpack.c.l.b16 %v92
    %v129 = vunpack.c.l.b16 %v93
    %v130 = vunpack.c.l.b16 %v94
    %v131 = vunpack.c.l.b16 %v95
    %v132 = vunpack.c.l.b16 %v96
    %v133 = vunpack.c.l.b16 %v97
    %v134 = vunpack.c.l.b16 %v98
    %v135 = vunpack.c.l.b16 %v99
    %v136 = vunpack.c.l.b16 %v100
    %v137 = vunpack.c.l.b16 %v101
    %v138 = vunpack.c.l.b16 %v102
    %v139 = vunpack.c.l.b16 %v103
    %v140 = vunpack.c.l.b16 %v104
    %v141 = vpack.c.b16 %v126, %v125
    %v142 = vpack.c.b16 %v128, %v127
    %v143 = vpack.c.b16 %v130, %v129
    %v144 = vpack.c.b16 %v132, %v131
    %v145 = vpack.c.b16 %v134, %v133
    %v146 = vpack.c.b16 %v136, %v135
    %v147 = vpack.c.b16 %v138, %v137
    %v148 = vpack.c.b16 %v140, %v139
    %157 = vmatpush.bf16.msra.mxu0 %v148
    %158 = vmatpush.bf16.msra.mxu0 %v147
    %159 = vmatpush.bf16.msra.mxu0 %v146
    %160 = vmatpush.bf16.msra.mxu0 %v145
    %161 = vmatpush.bf16.msra.mxu0 %v144
    %162 = vmatpush.bf16.msra.mxu0 %v143
    %163 = vmatpush.bf16.msra.mxu0 %v142
    %164 = vmatpush.bf16.msra.mxu0 %v141
    %165 = vmatmul.bf16.gmra.mxu0 %v88
    %v166 = vpop.f32.mrf.mxu0
    %v167 = vadd.f32 %v107, %v166
    %v168 = vpop.f32.mrf.mxu0
    %169 = vdwg.mxu0
    %v170 = vmax.f32 %v167, 0.0
    %v171 = vpack.c.bf16 %v170, %v170
    %v172 = vld [vmem:[#allocation4] sm:$0xf]
    %v173 = vld [vmem:[#allocation4 + $0x4] sm:$0xf]
    %v174 = vld [vmem:[#allocation4 + $0x8] sm:$0xf]
    %v175 = vld [vmem:[#allocation4 + $0xc] sm:$0xf]
    %v176 = vld [vmem:[#allocation4 + $0x10] sm:$0xf]
    %v177 = vld [vmem:[#allocation4 + $0x14] sm:$0xf]
    %v178 = vld [vmem:[#allocation4 + $0x18] sm:$0xf]
    %v179 = vld [vmem:[#allocation4 + $0x1c] sm:$0xf]
    %v180 = vld [vmem:[#allocation4 + $0x20] sm:$0xf]
    %v181 = vld [vmem:[#allocation4 + $0x24] sm:$0xf]
    %v182 = vld [vmem:[#allocation4 + $0x28] sm:$0xf]
    %v183 = vld [vmem:[#allocation4 + $0x2c] sm:$0xf]
    %v184 = vld [vmem:[#allocation4 + $0x30] sm:$0xf]
    %v185 = vld [vmem:[#allocation4 + $0x34] sm:$0xf]
    %v186 = vld [vmem:[#allocation4 + $0x38] sm:$0xf]
    %v187 = vld [vmem:[#allocation4 + $0x3c] sm:$0xf]
    %v188 = vld [vmem:[%s6] sm:$0x1]
    %v190 = vperm.slane %v188, 0
    %v208 = vunpack.c.l.b16 %v172
    %v209 = vunpack.c.l.b16 %v173
    %v210 = vunpack.c.l.b16 %v174
    %v211 = vunpack.c.l.b16 %v175
    %v212 = vunpack.c.l.b16 %v176
    %v213 = vunpack.c.l.b16 %v177
    %v214 = vunpack.c.l.b16 %v178
    %v215 = vunpack.c.l.b16 %v179
    %v216 = vunpack.c.l.b16 %v180
    %v217 = vunpack.c.l.b16 %v181
    %v218 = vunpack.c.l.b16 %v182
    %v219 = vunpack.c.l.b16 %v183
    %v220 = vunpack.c.l.b16 %v184
    %v221 = vunpack.c.l.b16 %v185
    %v222 = vunpack.c.l.b16 %v186
    %v223 = vunpack.c.l.b16 %v187
    %v224 = vpack.c.b16 %v209, %v208
    %v225 = vpack.c.b16 %v211, %v210
    %v226 = vpack.c.b16 %v213, %v212
    %v227 = vpack.c.b16 %v215, %v214
    %v228 = vpack.c.b16 %v217, %v216
    %v229 = vpack.c.b16 %v219, %v218
    %v230 = vpack.c.b16 %v221, %v220
    %v231 = vpack.c.b16 %v223, %v222
    %240 = vmatpush.bf16.msra.mxu0 %v231
    %241 = vmatpush.bf16.msra.mxu0 %v230
    %242 = vmatpush.bf16.msra.mxu0 %v229
    %243 = vmatpush.bf16.msra.mxu0 %v228
    %244 = vmatpush.bf16.msra.mxu0 %v227
    %245 = vmatpush.bf16.msra.mxu0 %v226
    %246 = vmatpush.bf16.msra.mxu0 %v225
    %247 = vmatpush.bf16.msra.mxu0 %v224
    %248 = vmatmul.bf16.gmra.mxu0 %v171
    %v249 = vpop.f32.mrf.mxu0
    %v250 = vadd.f32 %v190, %v249
    %v251 = vpop.f32.mrf.mxu0
    %252 = vdwg.mxu0
    %253 = vmax.xlane.f32.xlu0 %v250
    %v254 = vpop.xlane.xlu0 %253
    %v255 = vsub.f32 %v250, %v254
    %v256 = vmul.f32 %v255, 1.442695
    %v257 = vpow.pop %v256
    %258 = vadd.xlane.f32.xlu0 %v257
    %v259 = vpop.xlane.xlu0 %258
    %v260 = vrcp.pop %v259
    %v261 = vmul.f32 %v259, %v260
    %v262 = vsub.f32 1.0, %v261
    %v263 = vmul.f32 %v260, %v262
    %v264 = vadd.f32 %v260, %v263
    %vm265 = vweird.f32 %v259
    %vm266 = vweird.f32 %v260
    %vm267 = vmor %vm265, %vm266
    %v268 = vsel %vm267, %v260, %v264
    %v269 = vand.u32 2147483647, %v259
    %vm270 = vcmp.eq.f32.partialorder %v269, 8.507059e+37
    %v271 = vand.u32 %v259, 2147483648
    %v272 = vor.u32 1.1754944e-38, %v271
    %v273 = vsel %vm270, %v272, %v268
    %v274 = vmul.f32 %v257, %v273
    %vm275 = vcmask 15360
    %276 = vst.msk [vmem:[%s7] sm:$0xff] %vm275, %v274
    // Predicated region
    $region38: #{tpu_custom_call.1} parent=1 // pred_check
      _
    $region39: #{tpu_custom_call.1} parent=1 // pred_check_branch
      %278 = sbr.rel (0) target = $region41
    $region40: #{tpu_custom_call.1} parent=1 // pred_region
      _
    $region41: #{tpu_custom_call.1} parent=1 // pred_fallthru
      _
    // Predicated region
    $region42: #{tpu_custom_call.1} parent=1 // pred_check
      _
    $region43: #{tpu_custom_call.1} parent=1 // pred_check_branch
      %280 = sbr.rel (0) target = $region45
    $region44: #{tpu_custom_call.1} parent=1 // pred_region
      _
    $region45: #{tpu_custom_call.1} parent=1 // pred_fallthru
      _
    %281 = vsyncpa [#allocation3], 1
    %282 = vsyncpa [#allocation5], 1

</llo_original>
